<compile_context>
chip_gen: v5e
topology: v5e:2x2
jax: 0.10.0
libtpu: 0.0.40
codegen_flags: <defaults>
</compile_context>

<pallas_src>
import jax
import jax.numpy as jnp
from jax import lax
from jax.experimental import pallas as pl
from jax.experimental.pallas import tpu as pltpu

LANE = 128  # TPU lane width


# --------------------------- generation-aware knobs ---------------------------
def _hw_config():
    """Tiling knobs per TPU generation (v5e/v6e: 128 MiB VMEM, v7x: 64 MiB)."""
    vmem_cap = 64 << 20
    try:
        info = pltpu.get_tpu_info()
        vmem_cap = int(getattr(info, "vmem_capacity_bytes", vmem_cap))
    except Exception:
        pass
    if vmem_cap >= (100 << 20):  # v5e / v6e: big VMEM, lower HBM BW -> bigger tiles
        return {"budget": 32 << 20, "tm_cap": 4096, "vmem_clamp": 64 << 20, "n_buf": 3}
    # v7x: 64 MiB VMEM -> stay conservative
    return {"budget": 16 << 20, "tm_cap": 2048, "vmem_clamp": 48 << 20, "n_buf": 2}


def _pick_tile(HW, Cin, Cout, itemsize, cfg):
    """Spatial (lane-axis) tile: multiple of 128, VMEM-budgeted, prefers HW % TM == 0."""
    if HW <= LANE:
        return int(HW)  # full-extent block is always layout-legal
    # Bytes per spatial column actually resident: pipelined x buffers + pass-2 out.
    per_col = cfg["n_buf"] * Cin * itemsize + 2 * Cout * itemsize
    tm = cfg["budget"] // max(per_col, 1)
    tm = (tm // LANE) * LANE
    tm = max(LANE, min(cfg["tm_cap"], tm))
    tm = min(tm, max(LANE, (HW // LANE) * LANE))
    # Prefer a tile that divides HW exactly so no per-tile boundary masking is needed.
    for d in range(tm, max(LANE, tm // 4) - 1, -LANE):
        if HW % d == 0:
            return int(d)
    return int(tm)


def _buffered_spec(block_shape, index_map, n_buf):
    """x BlockSpec; deeper pipeline on big-VMEM generations when the API allows it."""
    if n_buf > 2:
        try:
            return pl.BlockSpec(block_shape, index_map, pipeline_mode=pl.Buffered(n_buf))
        except Exception:
            pass
    return pl.BlockSpec(block_shape, index_map)


# ------------- kernel 1: input-moment (Gram) statistics pass ------------------
def _make_stats_kernel(HW, TM, n_sp, n_inner):
    needs_mask = (HW % TM) != 0

    def _accum(x, g_ref, s_ref):
        # Gram matrix: G += x @ x^T   (MXU, contraction over the TM lane axis).
        g_ref[0, 0] += lax.dot_general(
            x, x, (((1,), (1,)), ((), ())), preferred_element_type=jnp.float32)
        # Row sums via an MXU dot against a ones column (keeps the XLU/VPU free).
        ones = jnp.ones((x.shape[1], 1), dtype=x.dtype)
        s_ref[0, 0] += jnp.dot(x, ones, preferred_element_type=jnp.float32)

    def kernel(x_ref, g_ref, s_ref):
        c = pl.program_id(1)   # spatial chunk (parallel)
        i = pl.program_id(2)   # spatial tile within chunk (reduction)

        @pl.when(i == 0)
        def _init():
            g_ref[...] = jnp.zeros_like(g_ref)
            s_ref[...] = jnp.zeros_like(s_ref)

        x = x_ref[0]                                    # (Cin, TM)
        if not needs_mask:
            _accum(x, g_ref, s_ref)
        else:
            tile = c * n_inner + i                      # global spatial-tile index
            is_last = tile == (n_sp - 1)

            @pl.when(jnp.logical_not(is_last))
            def _interior():                            # interior tiles: no mask cost
                _accum(x, g_ref, s_ref)

            @pl.when(is_last)
            def _boundary():                            # only the last tile is masked
                col = tile * TM + lax.broadcasted_iota(jnp.int32, x.shape, 1)
                xm = jnp.where(col < HW, x, jnp.zeros_like(x))
                _accum(xm, g_ref, s_ref)

    return kernel


# ------------- kernel 2: 1x1 conv (scale pre-folded) + shift + ReLU -----------
def _bn_relu_kernel(x_ref, w2_ref, shift_ref, o_ref):
    y = jnp.dot(w2_ref[...], x_ref[0], preferred_element_type=jnp.float32)  # (Cout, TM)
    o_ref[0] = jnp.maximum(y + shift_ref[...], 0.0).astype(o_ref.dtype)


# --------------------------------- wrapper ------------------------------------
def cbr_block_forward(x_nchw, weight, gamma, beta, eps=1e-5):
    """Forward of CBRBlock with module defaults (kernel_size=1, stride=1, padding=0)."""
    # TODO(synk): general kernel_size>1 / stride / padding would need an im2col step;
    # the module defaults (1x1 conv) are implemented here.
    # TODO(synk): BatchNorm running_mean/running_var buffer updates are not produced.
    N, Cin, H, W = x_nchw.shape
    Cout = weight.shape[0]
    assert weight.shape == (Cout, Cin, 1, 1), "only 1x1 convolution is supported"

    HW = H * W
    x = x_nchw.reshape(N, Cin, HW)                      # pure reshape, no HBM pass
    w32 = weight.reshape(Cout, Cin).astype(jnp.float32)

    itemsize = jnp.dtype(x.dtype).itemsize
    cfg = _hw_config()
    TM = _pick_tile(HW, Cin, Cout, itemsize, cfg)
    n_sp = pl.cdiv(HW, TM)

    # Megacore-friendly pass 1: when N == 1 add a parallel spatial-chunk axis.
    n_chunks = 2 if (N == 1 and n_sp >= 2 and n_sp % 2 == 0) else 1
    n_inner = n_sp // n_chunks

    vmem_est = (cfg["n_buf"] * TM * Cin * itemsize      # pipelined x tiles
                + 2 * TM * Cout * itemsize              # pass-2 output double buffer
                + 2 * Cin * Cout * itemsize             # weights (tiny)
                + 4 * Cin * (Cin + 1) * 4               # pass-1 accumulators (tiny)
                + (2 << 20))                            # headroom
    vmem_limit = int(min(max(vmem_est, 32 << 20), cfg["vmem_clamp"]))

    # ---- pass 1: per-(batch, chunk) input Gram matrix and row sums ----------
    x_spec1 = _buffered_spec((1, Cin, TM),
                             lambda n, c, i: (n, 0, c * n_inner + i), cfg["n_buf"])
    gram, sums = pl.pallas_call(
        _make_stats_kernel(HW, TM, n_sp, n_inner),
        out_shape=(
            jax.ShapeDtypeStruct((N, n_chunks, Cin, Cin), jnp.float32),
            jax.ShapeDtypeStruct((N, n_chunks, Cin, 1), jnp.float32),
        ),
        grid_spec=pltpu.PrefetchScalarGridSpec(
            num_scalar_prefetch=0,
            grid=(N, n_chunks, n_inner),
            in_specs=[x_spec1],
            out_specs=(
                pl.BlockSpec((1, 1, Cin, Cin), lambda n, c, i: (n, c, 0, 0)),
                pl.BlockSpec((1, 1, Cin, 1), lambda n, c, i: (n, c, 0, 0)),
            ),
        ),
        compiler_params=pltpu.CompilerParams(
            dimension_semantics=("parallel", "parallel", "arbitrary"),
            vmem_limit_bytes=vmem_limit,
        ),
    )(x)

    # ---- fold BatchNorm (training-mode biased batch stats) outside the kernel
    # sum_y = W @ sum(x);  sum_y2 = diag(W (sum x x^T) W^T)
    M_total = N * HW
    G = jnp.sum(gram, axis=(0, 1))                      # (Cin, Cin)
    s = jnp.sum(sums, axis=(0, 1))[:, 0]                # (Cin,)
    sum_y = w32 @ s                                     # (Cout,)
    sum_y2 = jnp.einsum("oc,cd,od->o", w32, G, w32)     # (Cout,)
    mean = sum_y / M_total
    var = jnp.maximum(sum_y2 / M_total - mean * mean, 0.0)
    scale = gamma.astype(jnp.float32) * lax.rsqrt(var + eps)
    shift = (beta.astype(jnp.float32) - mean * scale).reshape(Cout, 1)
    w2 = (scale[:, None] * w32).astype(x.dtype)         # BN scale folded into the weight

    # ---- pass 2: recompute conv with folded weight, add shift, ReLU, store ---
    x_spec2 = _buffered_spec((1, Cin, TM), lambda n, si: (n, 0, si), cfg["n_buf"])
    out = pl.pallas_call(
        _bn_relu_kernel,
        out_shape=jax.ShapeDtypeStruct((N, Cout, HW), x.dtype),
        grid_spec=pltpu.PrefetchScalarGridSpec(
            num_scalar_prefetch=0,
            grid=(N, n_sp),
            in_specs=[
                x_spec2,
                pl.BlockSpec((Cout, Cin), lambda n, si: (0, 0)),
                pl.BlockSpec((Cout, 1), lambda n, si: (0, 0)),
            ],
            out_specs=pl.BlockSpec((1, Cout, TM), lambda n, si: (n, 0, si)),
        ),
        compiler_params=pltpu.CompilerParams(
            dimension_semantics=("parallel", "parallel"),
            vmem_limit_bytes=vmem_limit,
        ),
    )(x, w2, shift)

    return out.reshape(N, Cout, H, W)


# ---------------- pure-JAX reference (for correctness check) ------------------
def _reference(x, weight, gamma, beta, eps=1e-5):
    Cout, Cin = weight.shape[0], weight.shape[1]
    w = weight.reshape(Cout, Cin).astype(jnp.float32)
    y = jnp.einsum("nchw,oc->nohw", x.astype(jnp.float32), w)
    mean = y.mean(axis=(0, 2, 3), keepdims=True)
    var = y.var(axis=(0, 2, 3), keepdims=True)  # biased, as PyTorch BN training
    yhat = (y - mean) / jnp.sqrt(var + eps)
    out = yhat * gamma.reshape(1, -1, 1, 1) + beta.reshape(1, -1, 1, 1)
    return jnp.maximum(out, 0.0)


if __name__ == "__main__":
    key = jax.random.PRNGKey(0)
    k_x, k_w, k_g, k_b = jax.random.split(key, 4)

    # Case 1: even spatial extent (no boundary masking), batch-parallel stats pass.
    N, Cin, Cout, H, W = 2, 4, 8, 16, 16
    x = jax.random.normal(k_x, (N, Cin, H, W), dtype=jnp.float32)
    weight = 0.1 * jax.random.normal(k_w, (Cout, Cin, 1, 1), dtype=jnp.float32)
    gamma = 1.0 + 0.1 * jax.random.normal(k_g, (Cout,), dtype=jnp.float32)
    beta = 0.1 * jax.random.normal(k_b, (Cout,), dtype=jnp.float32)

    out = jax.block_until_ready(cbr_block_forward(x, weight, gamma, beta))
    ref = _reference(x, weight, gamma, beta)
    assert out.shape == (N, Cout, H, W)
    assert jnp.allclose(out, ref, rtol=1e-4, atol=1e-4), "case 1 mismatch vs reference"

    # Case 2: N=1 (chunked parallel stats pass) with a partial boundary tile (HW=169).
    k_x2, k_w2, k_g2, k_b2 = jax.random.split(jax.random.PRNGKey(0), 4)
    N2, Cin2, Cout2, H2, W2 = 1, 3, 5, 13, 13
    x2 = jax.random.normal(k_x2, (N2, Cin2, H2, W2), dtype=jnp.float32)
    weight2 = 0.1 * jax.random.normal(k_w2, (Cout2, Cin2, 1, 1), dtype=jnp.float32)
    gamma2 = 1.0 + 0.1 * jax.random.normal(k_g2, (Cout2,), dtype=jnp.float32)
    beta2 = 0.1 * jax.random.normal(k_b2, (Cout2,), dtype=jnp.float32)

    out2 = jax.block_until_ready(cbr_block_forward(x2, weight2, gamma2, beta2))
    ref2 = _reference(x2, weight2, gamma2, beta2)
    assert out2.shape == (N2, Cout2, H2, W2)
    assert jnp.allclose(out2, ref2, rtol=1e-4, atol=1e-4), "case 2 mismatch vs reference"

    print("KERNEL_OK")
</pallas_src>

<mosaic_0001>
module attributes {stable_mosaic.version = 11 : i64} {
  func.func @kernel(%arg0: i32, %arg1: i32, %arg2: i32, %arg3: memref<1x4x256xf32, #tpu.memory_space<vmem>>, %arg4: memref<1x1x4x4xf32, #tpu.memory_space<vmem>>, %arg5: memref<1x1x4x1xf32, #tpu.memory_space<vmem>>) attributes {dimension_semantics = [#tpu.dimension_semantics<parallel>, #tpu.dimension_semantics<parallel>, #tpu.dimension_semantics<arbitrary>], iteration_bounds = array<i64: 2, 1, 1>, scalar_prefetch = 0 : i64, scratch_operands = 0 : i64, tpu.core_type = #tpu.core_type<tc>, window_params = [{transform_indices = @transform_0, window_bounds = array<i64: 1, 4, 256>}, {transform_indices = @transform_1, window_bounds = array<i64: 1, 1, 4, 4>}, {transform_indices = @transform_2, window_bounds = array<i64: 1, 1, 4, 1>}]} {
    %c0_i32 = arith.constant 0 : i32
    %0 = arith.cmpi eq, %arg2, %c0_i32 : i32
    %1 = arith.extui %0 : i1 to i32
    %c0_i32_0 = arith.constant 0 : i32
    %2 = arith.cmpi ne, %1, %c0_i32_0 : i32
    scf.if %2 {
      %cst_21 = arith.constant 0.000000e+00 : f32
      %20 = vector.broadcast %cst_21 : f32 to vector<1x1x4x4xf32>
      %c0_22 = arith.constant 0 : index
      %c0_23 = arith.constant 0 : index
      %c0_24 = arith.constant 0 : index
      %c0_25 = arith.constant 0 : index
      %21 = vector.load %arg4[%c0_22, %c0_23, %c0_24, %c0_25] : memref<1x1x4x4xf32, #tpu.memory_space<vmem>>, vector<1x1x4x4xf32>
      tpu.vector_store %arg4[%c0_22, %c0_23, %c0_24, %c0_25], %20 {strides = array<i32>} : memref<1x1x4x4xf32, #tpu.memory_space<vmem>>, vector<1x1x4x4xf32>,
      %cst_26 = arith.constant 0.000000e+00 : f32
      %22 = vector.broadcast %cst_26 : f32 to vector<1x1x4x1xf32>
      %c0_27 = arith.constant 0 : index
      %c0_28 = arith.constant 0 : index
      %c0_29 = arith.constant 0 : index
      %c0_30 = arith.constant 0 : index
      %23 = vector.load %arg5[%c0_27, %c0_28, %c0_29, %c0_30] : memref<1x1x4x1xf32, #tpu.memory_space<vmem>>, vector<1x1x4x1xf32>
      tpu.vector_store %arg5[%c0_27, %c0_28, %c0_29, %c0_30], %22 {strides = array<i32>} : memref<1x1x4x1xf32, #tpu.memory_space<vmem>>, vector<1x1x4x1xf32>,
    } else {
    }
    %c0 = arith.constant 0 : index
    %c0_1 = arith.constant 0 : index
    %c0_2 = arith.constant 0 : index
    %3 = vector.load %arg3[%c0, %c0_1, %c0_2] : memref<1x4x256xf32, #tpu.memory_space<vmem>>, vector<1x4x256xf32>
    %4 = vector.shape_cast %3 : vector<1x4x256xf32> to vector<4x256xf32>
    %c0_3 = arith.constant 0 : index
    %c0_4 = arith.constant 0 : index
    %c0_5 = arith.constant 0 : index
    %c0_6 = arith.constant 0 : index
    %5 = vector.load %arg4[%c0_3, %c0_4, %c0_5, %c0_6] : memref<1x1x4x4xf32, #tpu.memory_space<vmem>>, vector<1x1x4x4xf32>
    %6 = vector.shape_cast %5 : vector<1x1x4x4xf32> to vector<4x4xf32>
    %cst = arith.constant dense<0.000000e+00> : vector<4x4xf32>
    %7 = tpu.matmul %4, %4, %cst {dimension_numbers = #tpu.dot_dimension_numbers<[1], [1], [0], [0], [0, 0, 1, 0], [], []>} : vector<4x256xf32>, vector<4x256xf32>, vector<4x4xf32> -> vector<4x4xf32>
    %8 = arith.addf %6, %7 : vector<4x4xf32>
    %c0_7 = arith.constant 0 : index
    %c0_8 = arith.constant 0 : index
    %c0_9 = arith.constant 0 : index
    %c0_10 = arith.constant 0 : index
    %9 = vector.load %arg4[%c0_7, %c0_8, %c0_9, %c0_10] : memref<1x1x4x4xf32, #tpu.memory_space<vmem>>, vector<1x1x4x4xf32>
    %10 = vector.shape_cast %9 : vector<1x1x4x4xf32> to vector<4x4xf32>
    %11 = vector.shape_cast %8 : vector<4x4xf32> to vector<1x1x4x4xf32>
    tpu.vector_store %arg4[%c0_7, %c0_8, %c0_9, %c0_10], %11 {strides = array<i32>} : memref<1x1x4x4xf32, #tpu.memory_space<vmem>>, vector<1x1x4x4xf32>,
    %cst_11 = arith.constant 1.000000e+00 : f32
    %12 = vector.broadcast %cst_11 : f32 to vector<256x1xf32>
    %c0_12 = arith.constant 0 : index
    %c0_13 = arith.constant 0 : index
    %c0_14 = arith.constant 0 : index
    %c0_15 = arith.constant 0 : index
    %13 = vector.load %arg5[%c0_12, %c0_13, %c0_14, %c0_15] : memref<1x1x4x1xf32, #tpu.memory_space<vmem>>, vector<1x1x4x1xf32>
    %14 = vector.shape_cast %13 : vector<1x1x4x1xf32> to vector<4x1xf32>
    %cst_16 = arith.constant dense<0.000000e+00> : vector<4x1xf32>
    %15 = tpu.matmul %4, %12, %cst_16 {dimension_numbers = #tpu.dot_dimension_numbers<[1], [0], [0], [1], [0, 0, 1, 1], [], []>} : vector<4x256xf32>, vector<256x1xf32>, vector<4x1xf32> -> vector<4x1xf32>
    %16 = arith.addf %14, %15 : vector<4x1xf32>
    %c0_17 = arith.constant 0 : index
    %c0_18 = arith.constant 0 : index
    %c0_19 = arith.constant 0 : index
    %c0_20 = arith.constant 0 : index
    %17 = vector.load %arg5[%c0_17, %c0_18, %c0_19, %c0_20] : memref<1x1x4x1xf32, #tpu.memory_space<vmem>>, vector<1x1x4x1xf32>
    %18 = vector.shape_cast %17 : vector<1x1x4x1xf32> to vector<4x1xf32>
    %19 = vector.shape_cast %16 : vector<4x1xf32> to vector<1x1x4x1xf32>
    tpu.vector_store %arg5[%c0_17, %c0_18, %c0_19, %c0_20], %19 {strides = array<i32>} : memref<1x1x4x1xf32, #tpu.memory_space<vmem>>, vector<1x1x4x1xf32>,
    return
  }
  func.func @transform_0(%arg0: i32, %arg1: i32, %arg2: i32) -> (i32, i32, i32) {
    %c1_i32 = arith.constant 1 : i32
    %0 = arith.muli %arg1, %c1_i32 : i32
    %1 = arith.addi %0, %arg2 : i32
    %c0_i32 = arith.constant 0 : i32
    %c0_i32_0 = arith.constant 0 : i32
    return %arg0, %c0_i32, %1 : i32, i32, i32
  }
  func.func @transform_1(%arg0: i32, %arg1: i32, %arg2: i32) -> (i32, i32, i32, i32) {
    %c0_i32 = arith.constant 0 : i32
    %c0_i32_0 = arith.constant 0 : i32
    %c0_i32_1 = arith.constant 0 : i32
    return %arg0, %arg1, %c0_i32, %c0_i32_0 : i32, i32, i32, i32
  }
  func.func @transform_2(%arg0: i32, %arg1: i32, %arg2: i32) -> (i32, i32, i32, i32) {
    %c0_i32 = arith.constant 0 : i32
    %c0_i32_0 = arith.constant 0 : i32
    %c0_i32_1 = arith.constant 0 : i32
    return %arg0, %arg1, %c0_i32, %c0_i32_0 : i32, i32, i32, i32
  }
}

</mosaic_0001>

<llo_original>
// kernel: tpu_custom_call.1
$region0: #{tpu_custom_call.1}
  #allocation0 [shape = 'u32[]', space=smem, size = 0x4, offset = 0x4, fixed_abs, tag = 'smem constant byte address 0x4 - core index']
  #allocation1 [shape = 'u32[72,128]{1,0:T(1,128)}', space=vmem, size = 0x9000, scoped, tag = 'internal scratch']
  %s0 = inlined_call_operand.hbm [shape: f32[2,4,256], index: 0, kind: input, shape index: {}]
  %s1 = inlined_call_operand.hbm [shape: f32[2,1,4,4], index: 1, kind: output, shape index: {0}]
  %s2 = inlined_call_operand.vmem [shape: f32[2,1,4,1], index: 2, kind: output, shape index: {1}]
  %3 = xla_tuple %s1, %s2
  %s4 = sld [smem:[#allocation0]]
  $region53: #{tpu_custom_call.1} parent=0
    _
  %s6 = ssub.s32 1, %s4
  %s7 = scalar_select 0, %s6, %s4
  $region1: #{tpu_custom_call.1} parent=0
    #allocation2 [shape = 'u8[8192]{0}', space=vmem, size = 0x2000, scoped, tag = 'input window, operand 0']
    #allocation3 [shape = 's32[2]{0}', space=sflag, size = 0x8, scoped, tag = 'scoped memory for tpu_custom_call.1']
    #allocation4 [shape = 's32[2]{0}', space=sflag, size = 0x8, scoped, tag = 'scoped memory for tpu_custom_call.1']
    #allocation5 [shape = 'u8[4096]{0}', space=vmem, size = 0x1000, scoped, tag = 'output window, operand 0']
    %8 = vsyncpa [#allocation3], 0
    %s9 = scalar_lea.sflag [#allocation3], 1
    %10 = vsyncpa %s9, 0
    %11 = vsyncpa [#allocation4], 0
    %s12 = scalar_lea.sflag [#allocation4], 1
    %13 = vsyncpa %s12, 0
    loop: start=0, step=1, limit=4
    $region2: #{tpu_custom_call.1} parent=1 // loop_pre_header
      _
    $region3: #{tpu_custom_call.1} parent=1 // loop_header
      %s15 = sphi 0, %s19
      %p16 = scmp.ge.s32.totalorder %s15, 4
      %s22 = sphi 0, %s41
      %s23 = sphi 0, %s37
      %s24 = sphi 0, %s33
      %s25 = sphi 0, %s22
      %s26 = sphi 0, %s23
      %s27 = sphi 0, %s24
      %s28 = sphi 0, %s25
      %s29 = sphi 0, %s26
      %s30 = sphi 0, %s27
      %s48 = sphi 0, %s50
      %s51 = sphi 0, %s48
      %s52 = sphi 0, %s51
      %s68 = sphi 0, %s52
      %s76 = sphi 0, %s78
      %s79 = sphi 0, %s76
      %s80 = sphi 0, %s79
      %s96 = sphi 0, %s80
      %s104 = sphi 0, %s106
      %s107 = sphi 0, %s104
      %s108 = sphi 0, %s107
      %s124 = sphi 0, %s108
    $region4: #{tpu_custom_call.1} parent=1 // loop_header_branch
      %18 = sbr.rel (%p16) target = $region8
    $region5: #{tpu_custom_call.1} parent=1 // loop_body
      %s20 = ssub.s32 %s15, 1
      %s21 = ssub.s32 %s15, 2
      %s31 = sadd.s32 1, %s24
      %p32 = scmp.ge.s32.totalorder %s31, 1
      %s33 = scalar_select %p32, 0, %s31
      %s34 = sadd.s32 1, %s23
      %s35 = scalar_select %p32, %s34, %s23
      %p36 = scmp.ge.s32.totalorder %s35, 1
      %s37 = scalar_select %p36, 0, %s35
      %s38 = sadd.s32 1, %s22
      %s39 = scalar_select %p36, %s38, %s22
      %p40 = scmp.ge.s32.totalorder %s39, 2
      %s41 = scalar_select %p40, 0, %s39
      %s42 = sadd.s32 %s23, %s24
      %s43 = sadd.s32 %s37, %s33
      %s44 = ssub.s32 %s22, %s41
      %s45 = ssub.s32 %s42, %s43
      %s46 = sor.u32 %s44, %s45
      %p47 = scmp.eq.s32.totalorder %s46, 0
      %s49 = sadd.s32 %s48, 1
      %s50 = scalar_select %p47, %s48, %s49
      %p53 = pneg %p47
      %p54 = scmp.eq.s32.totalorder %s15, 1
      %p55 = por %p53, %p54
      %p56 = scmp.ne.s32.totalorder %s48, %s51
      %p57 = scmp.eq.s32.totalorder %s15, 0
      %p58 = por %p56, %p57
      %p59 = scmp.ne.s32.totalorder %s48, %s51
      %p60 = scmp.eq.s32.totalorder %s20, 1
      %p61 = por %p59, %p60
      %p62 = scmp.ne.s32.totalorder %s51, %s52
      %p63 = scmp.eq.s32.totalorder %s20, 0
      %p64 = por %p62, %p63
      %p65 = scmp.ne.s32.totalorder %s51, %s52
      %p66 = scmp.eq.s32.totalorder %s21, 1
      %p67 = por %p65, %p66
      %p69 = scmp.ne.s32.totalorder %s52, %s68
      %p70 = scmp.eq.s32.totalorder %s21, 0
      %p71 = por %p69, %p70
      %s72 = ssub.s32 %s22, %s41
      %s73 = ssub.s32 %s23, %s37
      %s74 = sor.u32 %s72, %s73
      %p75 = scmp.eq.s32.totalorder %s74, 0
      %s77 = sadd.s32 %s76, 1
      %s78 = scalar_select %p75, %s76, %s77
      %p81 = pneg %p75
      %p82 = scmp.eq.s32.totalorder %s15, 1
      %p83 = por %p81, %p82
      %p84 = scmp.ne.s32.totalorder %s76, %s79
      %p85 = scmp.eq.s32.totalorder %s15, 0
      %p86 = por %p84, %p85
      %p87 = scmp.ne.s32.totalorder %s76, %s79
      %p88 = scmp.eq.s32.totalorder %s20, 1
      %p89 = por %p87, %p88
      %p90 = scmp.ne.s32.totalorder %s79, %s80
      %p91 = scmp.eq.s32.totalorder %s20, 0
      %p92 = por %p90, %p91
      %p93 = scmp.ne.s32.totalorder %s79, %s80
      %p94 = scmp.eq.s32.totalorder %s21, 1
      %p95 = por %p93, %p94
      %p97 = scmp.ne.s32.totalorder %s80, %s96
      %p98 = scmp.eq.s32.totalorder %s21, 0
      %p99 = por %p97, %p98
      %s100 = ssub.s32 %s22, %s41
      %s101 = ssub.s32 %s23, %s37
      %s102 = sor.u32 %s100, %s101
      %p103 = scmp.eq.s32.totalorder %s102, 0
      %s105 = sadd.s32 %s104, 1
      %s106 = scalar_select %p103, %s104, %s105
      %p109 = pneg %p103
      %p110 = scmp.eq.s32.totalorder %s15, 1
      %p111 = por %p109, %p110
      %p112 = scmp.ne.s32.totalorder %s104, %s107
      %p113 = scmp.eq.s32.totalorder %s15, 0
      %p114 = por %p112, %p113
      %p115 = scmp.ne.s32.totalorder %s104, %s107
      %p116 = scmp.eq.s32.totalorder %s20, 1
      %p117 = por %p115, %p116
      %p118 = scmp.ne.s32.totalorder %s107, %s108
      %p119 = scmp.eq.s32.totalorder %s20, 0
      %p120 = por %p118, %p119
      %p121 = scmp.ne.s32.totalorder %s107, %s108
      %p122 = scmp.eq.s32.totalorder %s21, 1
      %p123 = por %p121, %p122
      %p125 = scmp.ne.s32.totalorder %s108, %s124
      %p126 = scmp.eq.s32.totalorder %s21, 0
      %p127 = por %p125, %p126
      %p128 = scmp.le.s32.totalorder 1, %s15
      %p129 = scmp.lt.s32.totalorder %s15, 3
      %p130 = pnand %p128, %p129
      %p131 = pneg %p130
      // Predicated region
      $region9: #{tpu_custom_call.1} parent=5 // pred_check
        _
      $region10: #{tpu_custom_call.1} parent=5 // pred_check_branch
        %133 = sbr.rel (%p130) target = $region12
      $region11: #{tpu_custom_call.1} parent=5 // pred_region
        %s134 = ssub.s32 %s15, 1
      $region12: #{tpu_custom_call.1} parent=5 // pred_fallthru
        _
      %p135 = scmp.lt.s32.totalorder %s15, 2
      // Predicated region
      $region13: #{tpu_custom_call.1} parent=5 // pred_check
        %p136 = pneg %p135
      $region14: #{tpu_custom_call.1} parent=5 // pred_check_branch
        %138 = sbr.rel (%p136) target = $region16
      $region15: #{tpu_custom_call.1} parent=5 // pred_region
        // Predicated region
        $region17: #{tpu_custom_call.1} parent=15 // pred_check
          %p139 = pneg %p58
        $region18: #{tpu_custom_call.1} parent=15 // pred_check_branch
          %141 = sbr.rel (%p139) target = $region20
        $region19: #{tpu_custom_call.1} parent=15 // pred_region
          %s142 = sand.u32 %s48, 1
          %s143 = scalar_lea.sflag [#allocation3], %s142
          %s144 = sand.u32 %s48, 1
          %s145 = smul.addr %s144, 8
          %s146 = scalar_lea.vmem [#allocation2], %s145
          %s147 = sadd.s32 %s23, %s24
          %s148 = smul.u32 2, %s147
          %150 = vsyncadd %s143, 0
          %s151 = smul.addr %s22, 2
          %s152 = sadd.s32 %s148, %s151
          %s153 = smul.addr %s152, 4
          %s154 = scalar_lea.hbm %s0, %s153
          %s156 = sshll.u32 %s154, 4
          %s157 = int_to_ptr.hbm [resolvable:$true] %s156
          %s158 = sshll.u32 %s146, 4
          %s159 = int_to_ptr.vmem [resolvable:$true] %s158
          %161 = dma.hbm_to_vmem [thread:$0]  %s157, 128, %s159, %s143
        $region20: #{tpu_custom_call.1} parent=15 // pred_fallthru
          _
      $region16: #{tpu_custom_call.1} parent=5 // pred_fallthru
        _
      %p162 = scmp.le.s32.totalorder 1, %s15
      %p163 = scmp.lt.s32.totalorder %s15, 3
      %p164 = pnand %p162, %p163
      %p165 = pneg %p164
      // Predicated region
      $region21: #{tpu_custom_call.1} parent=5 // pred_check
        _
      $region22: #{tpu_custom_call.1} parent=5 // pred_check_branch
        %167 = sbr.rel (%p164) target = $region24
      $region23: #{tpu_custom_call.1} parent=5 // pred_region
        %s168 = ssub.s32 %s15, 1
        %s169 = sand.u32 %s51, 1
        %s170 = scalar_lea.sflag [#allocation3], %s169
        %s171 = sand.u32 %s51, 1
        %s172 = smul.addr %s171, 8
        %s173 = scalar_lea.vmem [#allocation2], %s172
        // Predicated region
        $region25: #{tpu_custom_call.1} parent=23 // pred_check
          %p174 = pneg %p64
        $region26: #{tpu_custom_call.1} parent=23 // pred_check_branch
          %176 = sbr.rel (%p174) target = $region28
        $region27: #{tpu_custom_call.1} parent=23 // pred_region
          %178 = dma.done %s170, 128
        $region28: #{tpu_custom_call.1} parent=23 // pred_fallthru
          _
        %s179 = sand.u32 %s51, 1
        %s180 = scalar_lea.sflag [#allocation3], %s179
        %s181 = sand.u32 %s51, 1
        %s182 = smul.addr %s181, 8
        %s183 = scalar_lea.vmem [#allocation2], %s182
        %p184 = pneg %p64
        %p185 = pneg %p61
        %p186 = pneg %p92
        %p187 = pneg %p89
        %s188 = sand.u32 %s79, 1
        %s189 = scalar_lea.sflag [#allocation4], %s188
        %s190 = sand.u32 %s79, 1
        %s191 = smul.addr %s190, 4
        %s192 = scalar_lea.vmem [#allocation5], %s191
        %p193 = pneg %p120
        %p194 = pneg %p117
        %p195 = scmp.lt.s32.totalorder %s25, 1
        %s196 = scalar_select %p195, %s25, 1
        %p197 = scmp.lt.s32.totalorder %s26, 0
        %s198 = scalar_select %p197, %s26, 0
        %s199 = sadd.s32 %s198, %s196
        %s200 = smul.addr %s199, 4
        %s201 = scalar_lea.vmem %s2, %s200
        %s202 = sadd.s32 %s26, %s27
        %s203 = smul.u32 2, %s202
        %p204 = scmp.lt.s32.totalorder %s25, 1
        %s205 = scalar_select %p204, %s25, 1
        %p206 = scmp.lt.s32.totalorder %s26, 0
        %s207 = scalar_select %p206, %s26, 0
        %s208 = sadd.s32 %s207, %s205
        %s209 = smul.addr %s208, 4
        %s210 = scalar_lea.vmem %s2, %s209
        %p211 = scmp.eq.s32.totalorder %s27, 0
        // Predicated region
        $region29: #{tpu_custom_call.1} parent=23 // pred_check
          %p212 = pneg %p211
        $region30: #{tpu_custom_call.1} parent=23 // pred_check_branch
          %214 = sbr.rel (%p212) target = $region32
        $region31: #{tpu_custom_call.1} parent=23 // pred_region
          %vm215 = vcmask 27648
          %216 = vst.msk [vmem:[%s192] sm:$0xf] %vm215, 0.0
          %vm217 = vcmask 3072
          %218 = vst.msk [vmem:[%s210] sm:$0xf] %vm217, 0.0
        $region32: #{tpu_custom_call.1} parent=23 // pred_fallthru
          _
        %v219 = vld [vmem:[%s173] sm:$0xff]
        %v220 = vld [vmem:[%s192] sm:$0xf]
        %222 = vst [vmem:[#allocation1] ss:$2 sm:$0xff] %v219
        %v223 = vld.sshfl [vmem:[#allocation1] sm:$0xff pattern:$0x75316420]
        %v224 = vld.sshfl [vmem:[#allocation1 + $0x8] sm:$0xff pattern:$0x75316420]
        %227 = vst [vmem:[#allocation1] ss:$2 sm:$0xff] %v219
        %v228 = vld.sshfl [vmem:[#allocation1] sm:$0xff pattern:$0x75316420]
        %v229 = vld.sshfl [vmem:[#allocation1 + $0x8] sm:$0xff pattern:$0x75316420]
        %232 = vmatpush.xpose.msra.mxu0 0.0
        %233 = vmatpush.xpose.msra.mxu0 0.0
        %234 = vmatpush.xpose.msra.mxu0 0.0
        %235 = vmatpush.xpose.msra.mxu0 0.0
        %236 = vmatpush.xpose.msra.mxu0 0.0
        %237 = vmatpush.xpose.msra.mxu0 0.0
        %238 = vmatpush.xpose.msra.mxu0 0.0
        %239 = vmatpush.xpose.msra.mxu0 0.0
        %240 = vmatpush.xpose.msra.mxu0 0.0
        %241 = vmatpush.xpose.msra.mxu0 0.0
        %242 = vmatpush.xpose.msra.mxu0 0.0
        %243 = vmatpush.xpose.msra.mxu0 0.0
        %244 = vmatpush.xpose.msra.mxu0 0.0
        %245 = vmatpush.xpose.msra.mxu0 0.0
        %246 = vmatpush.xpose.msra.mxu0 0.0
        %247 = vmatpush.xpose.msra.mxu0 %v228
        %248 = vmatmul.f32.gmra.mxu0 %v223
        %v249 = vpop.f32.mrf.mxu0
        %v250 = vadd.f32 0.0, %v249
        %251 = vdwg.mxu0
        %252 = vmatpush.xpose.msra.mxu0 0.0
        %253 = vmatpush.xpose.msra.mxu0 0.0
        %254 = vmatpush.xpose.msra.mxu0 0.0
        %255 = vmatpush.xpose.msra.mxu0 0.0
        %256 = vmatpush.xpose.msra.mxu0 0.0
        %257 = vmatpush.xpose.msra.mxu0 0.0
        %258 = vmatpush.xpose.msra.mxu0 0.0
        %259 = vmatpush.xpose.msra.mxu0 0.0
        %260 = vmatpush.xpose.msra.mxu0 0.0
        %261 = vmatpush.xpose.msra.mxu0 0.0
        %262 = vmatpush.xpose.msra.mxu0 0.0
        %263 = vmatpush.xpose.msra.mxu0 0.0
        %264 = vmatpush.xpose.msra.mxu0 0.0
        %265 = vmatpush.xpose.msra.mxu0 0.0
        %266 = vmatpush.xpose.msra.mxu0 0.0
        %267 = vmatpush.xpose.msra.mxu0 %v229
        %268 = vmatmul.f32.gmra.mxu0 %v224
        %v269 = vpop.f32.mrf.mxu0
        %v270 = vadd.f32 %v250, %v269
        %271 = vdwg.mxu0
        %v272 = vadd.f32 %v220, %v270
        %vm273 = vcmask 27648
        %274 = vst.msk [vmem:[%s192] sm:$0xf] %vm273, %v272
        %v275 = vld [vmem:[%s210] sm:$0xf]
        %276 = vst [vmem:[#allocation1] ss:$2 sm:$0xff] %v219
        %v277 = vld.sshfl [vmem:[#allocation1] sm:$0xff pattern:$0x75316420]
        %v278 = vld.sshfl [vmem:[#allocation1 + $0x8] sm:$0xff pattern:$0x75316420]
        %281 = vmatpush.msra.mxu0 1.0
        %282 = vmatpush.msra.mxu0 1.0
        %283 = vmatpush.msra.mxu0 1.0
        %284 = vmatpush.msra.mxu0 1.0
        %285 = vmatpush.msra.mxu0 1.0
        %286 = vmatpush.msra.mxu0 1.0
        %287 = vmatpush.msra.mxu0 1.0
        %288 = vmatpush.msra.mxu0 1.0
        %289 = vmatpush.msra.mxu0 1.0
        %290 = vmatpush.msra.mxu0 1.0
        %291 = vmatpush.msra.mxu0 1.0
        %292 = vmatpush.msra.mxu0 1.0
        %293 = vmatpush.msra.mxu0 1.0
        %294 = vmatpush.msra.mxu0 1.0
        %295 = vmatpush.msra.mxu0 1.0
        %296 = vmatpush.msra.mxu0 1.0
        %297 = vmatmul.f32.gmra.mxu0 %v277
        %v298 = vpop.f32.mrf.mxu0
        %v299 = vadd.f32 0.0, %v298
        %300 = vdwg.mxu0
        %301 = vmatpush.msra.mxu0 1.0
        %302 = vmatpush.msra.mxu0 1.0
        %303 = vmatpush.msra.mxu0 1.0
        %304 = vmatpush.msra.mxu0 1.0
        %305 = vmatpush.msra.mxu0 1.0
        %306 = vmatpush.msra.mxu0 1.0
        %307 = vmatpush.msra.mxu0 1.0
        %308 = vmatpush.msra.mxu0 1.0
        %309 = vmatpush.msra.mxu0 1.0
        %310 = vmatpush.msra.mxu0 1.0
        %311 = vmatpush.msra.mxu0 1.0
        %312 = vmatpush.msra.mxu0 1.0
        %313 = vmatpush.msra.mxu0 1.0
        %314 = vmatpush.msra.mxu0 1.0
        %315 = vmatpush.msra.mxu0 1.0
        %316 = vmatpush.msra.mxu0 1.0
        %317 = vmatmul.f32.gmra.mxu0 %v278
        %v318 = vpop.f32.mrf.mxu0
        %v319 = vadd.f32 %v299, %v318
        %320 = vdwg.mxu0
        %v321 = vadd.f32 %v275, %v319
        %vm322 = vcmask 3072
        %323 = vst.msk [vmem:[%s210] sm:$0xf] %vm322, %v321
        %s324 = sand.u32 %s79, 1
        %s325 = scalar_lea.sflag [#allocation4], %s324
        %s326 = sand.u32 %s79, 1
        %s327 = smul.addr %s326, 4
        %s328 = scalar_lea.vmem [#allocation5], %s327
        %p329 = scmp.lt.s32.totalorder %s25, 1
        %s330 = scalar_select %p329, %s25, 1
        %p331 = scmp.lt.s32.totalorder %s26, 0
        %s332 = scalar_select %p331, %s26, 0
        %s333 = sadd.s32 %s332, %s330
        %s334 = smul.addr %s333, 4
        %s335 = scalar_lea.vmem %s2, %s334
        // Predicated region
        $region33: #{tpu_custom_call.1} parent=23 // pred_check
          %p336 = pneg %p89
        $region34: #{tpu_custom_call.1} parent=23 // pred_check_branch
          %338 = sbr.rel (%p336) target = $region36
        $region35: #{tpu_custom_call.1} parent=23 // pred_region
          %340 = vsyncadd %s325, 0
          %s341 = sadd.s32 %s26, %s25
          %s342 = smul.addr %s341, 4
          %s343 = scalar_lea.hbm %s1, %s342
          %s345 = sshll.u32 %s328, 4
          %s346 = int_to_ptr.vmem [resolvable:$true] %s345
          %s347 = sshll.u32 %s343, 4
          %s348 = int_to_ptr.hbm [resolvable:$true] %s347
          %350 = dma.vmem_to_hbm [thread:$0]  %s346, 64, %s348, %s325
        $region36: #{tpu_custom_call.1} parent=23 // pred_fallthru
          _
        // Predicated region
        $region37: #{tpu_custom_call.1} parent=23 // pred_check
          %p351 = pneg %p117
        $region38: #{tpu_custom_call.1} parent=23 // pred_check_branch
          %353 = sbr.rel (%p351) target = $region40
        $region39: #{tpu_custom_call.1} parent=23 // pred_region
          _
        $region40: #{tpu_custom_call.1} parent=23 // pred_fallthru
          _
      $region24: #{tpu_custom_call.1} parent=5 // pred_fallthru
        _
      %p354 = scmp.le.s32.totalorder 2, %s15
      // Predicated region
      $region41: #{tpu_custom_call.1} parent=5 // pred_check
        %p355 = pneg %p354
      $region42: #{tpu_custom_call.1} parent=5 // pred_check_branch
        %357 = sbr.rel (%p355) target = $region44
      $region43: #{tpu_custom_call.1} parent=5 // pred_region
        %s358 = ssub.s32 %s15, 2
        // Predicated region
        $region45: #{tpu_custom_call.1} parent=43 // pred_check
          %p359 = pneg %p95
        $region46: #{tpu_custom_call.1} parent=43 // pred_check_branch
          %361 = sbr.rel (%p359) target = $region48
        $region47: #{tpu_custom_call.1} parent=43 // pred_region
          %s362 = sand.u32 %s80, 1
          %s363 = scalar_lea.sflag [#allocation4], %s362
          %s364 = sand.u32 %s80, 1
          %s365 = smul.addr %s364, 4
          %s366 = scalar_lea.vmem [#allocation5], %s365
          %368 = dma.done %s363, 64
        $region48: #{tpu_custom_call.1} parent=43 // pred_fallthru
          _
        // Predicated region
        $region49: #{tpu_custom_call.1} parent=43 // pred_check
          %p369 = pneg %p123
        $region50: #{tpu_custom_call.1} parent=43 // pred_check_branch
          %371 = sbr.rel (%p369) target = $region52
        $region51: #{tpu_custom_call.1} parent=43 // pred_region
          %p372 = scmp.lt.s32.totalorder %s28, 1
          %s373 = scalar_select %p372, %s28, 1
          %p374 = scmp.lt.s32.totalorder %s29, 0
          %s375 = scalar_select %p374, %s29, 0
          %s376 = sadd.s32 %s375, %s373
          %s377 = smul.addr %s376, 4
          %s378 = scalar_lea.vmem %s2, %s377
        $region52: #{tpu_custom_call.1} parent=43 // pred_fallthru
          _
      $region44: #{tpu_custom_call.1} parent=5 // pred_fallthru
        _
    $region6: #{tpu_custom_call.1} parent=1 // loop_footer
      %s19 = sadd.s32 1, %s15
    $region7: #{tpu_custom_call.1} parent=1 // loop_footer_branch
      %14 = sbr.rel target = $region3
    $region8: #{tpu_custom_call.1} parent=1 // loop_exit
      _
    %379 = vsyncpa [#allocation3], 1
    %s380 = scalar_lea.sflag [#allocation3], 1
    %381 = vsyncpa %s380, 1
    %382 = vsyncpa [#allocation4], 1
    %s383 = scalar_lea.sflag [#allocation4], 1
    %384 = vsyncpa %s383, 1

</llo_original>
